<compile_context>
chip_gen: v7x
topology: tpu7x:2x2x1
jax: 0.10.0
libtpu: 0.0.40
codegen_flags: <defaults>
</compile_context>

<pallas_src>
import functools
from typing import NamedTuple

import jax
import jax.numpy as jnp
from jax.experimental import pallas as pl
from jax.experimental.pallas import tpu as pltpu


def _round_up(v, m):
    return (v + m - 1) // m * m


def _pad2(x, rows, cols):
    r, c = x.shape
    return jnp.pad(x, ((0, rows - r), (0, cols - c)))


# ---------------------------------------------------------------------------
# Kernels
# ---------------------------------------------------------------------------

def _lora_kernel_fused(x_ref, wt_ref, b_ref, low_ref, up_ref, o_ref):
    """2-D grid (i, j): whole contraction done in one MXU pass per tile.

    No accumulator scratch, no k predicates.  x strip and low are
    grid-invariant across j (fetched once per row tile)."""
    y = jnp.dot(x_ref[...], wt_ref[...], preferred_element_type=jnp.float32)
    y += jnp.dot(low_ref[...], up_ref[...], preferred_element_type=jnp.float32)
    o_ref[...] = (y + b_ref[...]).astype(o_ref.dtype)


def _lora_kernel_ksplit(x_ref, wt_ref, b_ref, low_ref, up_ref, o_ref,
                        acc_ref, *, tile_k):
    """3-D grid (i, j, k): W^T streamed as (tk, tn) blocks, f32 accumulator.

    The x row-strip (tm, Dp) is K-resident; the (tm, tk) chunk is sliced
    in-kernel (lane-dim dynamic slice, 128-aligned start -> view, no copy)."""
    k = pl.program_id(2)
    nk = pl.num_programs(2)

    @pl.when(k == 0)
    def _init():
        acc_ref[...] = jnp.zeros_like(acc_ref)

    k_off = pl.multiple_of(k * tile_k, 128)
    x = x_ref[:, pl.ds(k_off, tile_k)]                     # (tm, tk) bf16
    acc_ref[...] += jnp.dot(x, wt_ref[...],
                            preferred_element_type=jnp.float32)

    @pl.when(k == nk - 1)
    def _writeback():
        delta = jnp.dot(low_ref[...], up_ref[...],
                        preferred_element_type=jnp.float32)
        o_ref[...] = (acc_ref[...] + b_ref[...] + delta).astype(o_ref.dtype)


# ---------------------------------------------------------------------------
# One-time (weight-load-time) preparation
# ---------------------------------------------------------------------------

class LoRAParams(NamedTuple):
    wt: jax.Array     # (Dp, Dp) bf16, W^T, zero-padded
    bias: jax.Array   # (1, Dp)  f32, zero-padded
    a: jax.Array      # (Dp, Rp) bf16, zero-padded
    up: jax.Array     # (Rp, Dp) bf16, alpha * B, zero-padded
    d: int
    dp: int
    rp: int
    tn: int


def lora_prepare(w, bias, a_down, b_up, *, alpha, tile_n=512,
                 compute_dtype=jnp.bfloat16):
    """Hoisted weight prep: pre-transpose W, fold alpha into the up-projection,
    cast to the compute dtype and zero-pad to 128-aligned tiles.  Call once at
    weight-load time -- NOT per forward call."""
    D = w.shape[0]
    R = a_down.shape[1]
    tn = min(_round_up(tile_n, 128), _round_up(D, 128))
    Dp = _round_up(D, tn)
    Rp = _round_up(R, 128)

    wt = _pad2(jnp.transpose(w), Dp, Dp).astype(compute_dtype)
    ap = _pad2(a_down, Dp, Rp).astype(compute_dtype)
    upp = _pad2(alpha * b_up, Rp, Dp).astype(compute_dtype)
    bp = _pad2(bias.reshape(1, D), 1, Dp).astype(jnp.float32)
    return LoRAParams(wt=wt, bias=bp, a=ap, up=upp, d=D, dp=Dp, rp=Rp, tn=tn)


# ---------------------------------------------------------------------------
# Forward
# ---------------------------------------------------------------------------

def lora_forward(x2d, params: LoRAParams, *, tile_m=512,
                 max_resident_k=4096, force_k_split=False,
                 compute_dtype=jnp.bfloat16, out_dtype=None):
    """y = x2d @ W^T + bias + alpha * (x2d @ A @ B), using prepared params."""
    M, D = x2d.shape
    assert D == params.d, "x feature dim does not match prepared weights"
    Dp, Rp, tn = params.dp, params.rp, params.tn
    out_dtype = compute_dtype if out_dtype is None else out_dtype

    # --- row-tile selection ------------------------------------------------
    tm = min(_round_up(tile_m, 128), _round_up(M, 128))
    # v7x has 2 TensorCores: ensure the "parallel" i axis has >= 2 tiles
    # whenever M allows it, otherwise one core idles.
    if M > 128 and _round_up(M, tm) // tm < 2:
        tm = _round_up(-(-M // 2), 128)
    # Keep the K-resident x strip (double-buffered bf16) within ~8 MiB so the
    # kernel also fits v7x's 64 MiB-physical / 32 MiB-scoped VMEM budget.
    while tm > 128 and 2 * tm * Dp * 2 > 8 * 1024 * 1024:
        tm = _round_up(tm // 2, 128)
    Mp = _round_up(M, tm)

    # --- K axis: collapse when the whole contraction fits comfortably -------
    k_split = force_k_split or Dp > max_resident_k
    tk = tn if k_split else Dp          # tn == tk on the split path

    # Per-call work: pad/cast x, precompute the tiny LoRA down-projection.
    xp = _pad2(x2d, Mp, Dp).astype(compute_dtype)
    lowp = jnp.dot(xp, params.a,
                   preferred_element_type=jnp.float32).astype(compute_dtype)

    vmem_limit = 48 * 1024 * 1024

    if not k_split:
        grid = (Mp // tm, Dp // tn)
        out = pl.pallas_call(
            _lora_kernel_fused,
            out_shape=jax.ShapeDtypeStruct((Mp, Dp), out_dtype),
            grid_spec=pltpu.PrefetchScalarGridSpec(
                num_scalar_prefetch=0,
                grid=grid,
                in_specs=[
                    pl.BlockSpec((tm, Dp), lambda i, j: (i, 0)),   # x strip (resident)
                    pl.BlockSpec((Dp, tn), lambda i, j: (0, j)),   # W^T column panel
                    pl.BlockSpec((1, tn), lambda i, j: (0, j)),    # bias slice
                    pl.BlockSpec((tm, Rp), lambda i, j: (i, 0)),   # low = x @ A
                    pl.BlockSpec((Rp, tn), lambda i, j: (0, j)),   # alpha * B
                ],
                out_specs=pl.BlockSpec((tm, tn), lambda i, j: (i, j)),
            ),
            compiler_params=pltpu.CompilerParams(
                dimension_semantics=("parallel", "parallel"),
                vmem_limit_bytes=vmem_limit,
            ),
        )(xp, params.wt, params.bias, lowp, params.up)
    else:
        grid = (Mp // tm, Dp // tn, Dp // tk)
        kernel = functools.partial(_lora_kernel_ksplit, tile_k=tk)
        out = pl.pallas_call(
            kernel,
            out_shape=jax.ShapeDtypeStruct((Mp, Dp), out_dtype),
            grid_spec=pltpu.PrefetchScalarGridSpec(
                num_scalar_prefetch=0,
                grid=grid,
                in_specs=[
                    pl.BlockSpec((tm, Dp), lambda i, j, k: (i, 0)),  # x strip (K-resident)
                    pl.BlockSpec((tk, tn), lambda i, j, k: (k, j)),  # W^T block
                    pl.BlockSpec((1, tn), lambda i, j, k: (0, j)),   # bias slice
                    pl.BlockSpec((tm, Rp), lambda i, j, k: (i, 0)),  # low = x @ A
                    pl.BlockSpec((Rp, tn), lambda i, j, k: (0, j)),  # alpha * B
                ],
                out_specs=pl.BlockSpec((tm, tn), lambda i, j, k: (i, j)),
                scratch_shapes=[pltpu.VMEM((tm, tn), jnp.float32)],
            ),
            compiler_params=pltpu.CompilerParams(
                dimension_semantics=("parallel", "parallel", "arbitrary"),
                vmem_limit_bytes=vmem_limit,
            ),
        )(xp, params.wt, params.bias, lowp, params.up)

    return out[:M, :D]


# ---------------------------------------------------------------------------
# Reference / test
# ---------------------------------------------------------------------------

def _bf16_consistent_ref(x2d, w, bias, a_down, b_up, alpha):
    """Pure-JAX reference with the same bf16 input rounding as the kernel."""
    f32, cd = jnp.float32, jnp.bfloat16
    xr = x2d.astype(cd).astype(f32)
    wtr = jnp.transpose(w).astype(cd).astype(f32)
    ar = a_down.astype(cd).astype(f32)
    upr = (alpha * b_up).astype(cd).astype(f32)
    return xr @ wtr + bias.astype(f32) + (xr @ ar) @ upr


def _check(out, ref, name, tol=2e-2):
    out = out.astype(jnp.float32)
    err = float(jnp.max(jnp.abs(out - ref)) / (jnp.max(jnp.abs(ref)) + 1e-6))
    assert err < tol, f"{name}: relative error {err:.3e} exceeds {tol:.1e}"


if __name__ == "__main__":
    # Shapes consistent with the module: batch=2, seq=8, hidden=32, rank=32.
    batch, seq, hidden, rank, alpha = 2, 8, 32, 32, 16

    key = jax.random.PRNGKey(0)
    kx, kw, kb, ka, ku = jax.random.split(key, 5)

    x = jax.random.normal(kx, (batch, seq, hidden), dtype=jnp.float32)
    w = jax.random.normal(kw, (hidden, hidden), dtype=jnp.float32) * 0.05
    bias = jax.random.normal(kb, (hidden,), dtype=jnp.float32) * 0.01
    std = 1.0 / jnp.sqrt(jnp.float32(rank))
    a_down = jax.random.normal(ka, (hidden, rank), dtype=jnp.float32) * std
    # Module zero-inits the upsample; use small random values so the LoRA
    # path is exercised numerically.
    b_up = jax.random.normal(ku, (rank, hidden), dtype=jnp.float32) * 0.02

    # One-time weight prep (hoisted out of the forward path).
    params = lora_prepare(w, bias, a_down, b_up, alpha=alpha)
    jax.block_until_ready(params.wt)

    x2d = x.reshape(batch * seq, hidden)
    out2d = lora_forward(x2d, params)
    out = out2d.reshape(batch, seq, hidden)
    jax.block_until_ready(out)
    _check(out2d, _bf16_consistent_ref(x2d, w, bias, a_down, b_up, alpha), "small")

    # Larger, non-128-aligned case: exercises padding, multi-tile (i, j) grid,
    # the small-M tm-shrink logic, and BOTH kernel paths (fused + K-split).
    M2, D2, R2 = 300, 640, 32
    k2 = jax.random.split(key, 6)
    x2 = jax.random.normal(k2[0], (M2, D2), dtype=jnp.float32)
    w2 = jax.random.normal(k2[1], (D2, D2), dtype=jnp.float32) * 0.05
    b2 = jax.random.normal(k2[2], (D2,), dtype=jnp.float32) * 0.01
    a2 = jax.random.normal(k2[3], (D2, R2), dtype=jnp.float32) / jnp.sqrt(jnp.float32(R2))
    u2 = jax.random.normal(k2[4], (R2, D2), dtype=jnp.float32) * 0.02

    params2 = lora_prepare(w2, b2, a2, u2, alpha=alpha)
    ref2 = _bf16_consistent_ref(x2, w2, b2, a2, u2, alpha)

    out_fused = lora_forward(x2, params2)                         # 2-D fused path
    jax.block_until_ready(out_fused)
    _check(out_fused, ref2, "tiled-fused")

    out_split = lora_forward(x2, params2, force_k_split=True)     # 3-D K-split path
    jax.block_until_ready(out_split)
    _check(out_split, ref2, "tiled-ksplit")

    print("KERNEL_OK")
</pallas_src>

<mosaic_0001>
module attributes {stable_mosaic.version = 11 : i64} {
  func.func @_lora_kernel_fused(%arg0: i32, %arg1: i32, %arg2: memref<128x128xbf16, #tpu.memory_space<vmem>>, %arg3: memref<128x128xbf16, #tpu.memory_space<vmem>>, %arg4: memref<1x128xf32, #tpu.memory_space<vmem>>, %arg5: memref<128x128xbf16, #tpu.memory_space<vmem>>, %arg6: memref<128x128xbf16, #tpu.memory_space<vmem>>, %arg7: memref<128x128xbf16, #tpu.memory_space<vmem>>) attributes {dimension_semantics = [#tpu.dimension_semantics<parallel>, #tpu.dimension_semantics<parallel>], iteration_bounds = array<i64: 1, 1>, scalar_prefetch = 0 : i64, scratch_operands = 0 : i64, tpu.core_type = #tpu.core_type<tc>, window_params = [{transform_indices = @transform_0, window_bounds = array<i64: 128, 128>}, {transform_indices = @transform_1, window_bounds = array<i64: 128, 128>}, {transform_indices = @transform_2, window_bounds = array<i64: 1, 128>}, {transform_indices = @transform_3, window_bounds = array<i64: 128, 128>}, {transform_indices = @transform_4, window_bounds = array<i64: 128, 128>}, {transform_indices = @transform_5, window_bounds = array<i64: 128, 128>}]} {
    %c0 = arith.constant 0 : index
    %c0_0 = arith.constant 0 : index
    %0 = vector.load %arg2[%c0, %c0_0] : memref<128x128xbf16, #tpu.memory_space<vmem>>, vector<128x128xbf16>
    %c0_1 = arith.constant 0 : index
    %c0_2 = arith.constant 0 : index
    %1 = vector.load %arg3[%c0_1, %c0_2] : memref<128x128xbf16, #tpu.memory_space<vmem>>, vector<128x128xbf16>
    %cst = arith.constant dense<0.000000e+00> : vector<128x128xf32>
    %2 = tpu.matmul %0, %1, %cst {dimension_numbers = #tpu.dot_dimension_numbers<[1], [0], [0], [1], [0, 0, 1, 1], [], []>} : vector<128x128xbf16>, vector<128x128xbf16>, vector<128x128xf32> -> vector<128x128xf32>
    %c0_3 = arith.constant 0 : index
    %c0_4 = arith.constant 0 : index
    %3 = vector.load %arg5[%c0_3, %c0_4] : memref<128x128xbf16, #tpu.memory_space<vmem>>, vector<128x128xbf16>
    %c0_5 = arith.constant 0 : index
    %c0_6 = arith.constant 0 : index
    %4 = vector.load %arg6[%c0_5, %c0_6] : memref<128x128xbf16, #tpu.memory_space<vmem>>, vector<128x128xbf16>
    %cst_7 = arith.constant dense<0.000000e+00> : vector<128x128xf32>
    %5 = tpu.matmul %3, %4, %cst_7 {dimension_numbers = #tpu.dot_dimension_numbers<[1], [0], [0], [1], [0, 0, 1, 1], [], []>} : vector<128x128xbf16>, vector<128x128xbf16>, vector<128x128xf32> -> vector<128x128xf32>
    %6 = arith.addf %2, %5 : vector<128x128xf32>
    %c0_8 = arith.constant 0 : index
    %c0_9 = arith.constant 0 : index
    %7 = vector.load %arg4[%c0_8, %c0_9] : memref<1x128xf32, #tpu.memory_space<vmem>>, vector<1x128xf32>
    %8 = vector.broadcast %7 : vector<1x128xf32> to vector<128x128xf32>
    %9 = arith.addf %6, %8 : vector<128x128xf32>
    %10 = arith.truncf %9 : vector<128x128xf32> to vector<128x128xbf16>
    %c0_10 = arith.constant 0 : index
    %c0_11 = arith.constant 0 : index
    %11 = vector.load %arg7[%c0_10, %c0_11] : memref<128x128xbf16, #tpu.memory_space<vmem>>, vector<128x128xbf16>
    tpu.vector_store %arg7[%c0_10, %c0_11], %10 {strides = array<i32>} : memref<128x128xbf16, #tpu.memory_space<vmem>>, vector<128x128xbf16>,
    return
  }
  func.func @transform_0(%arg0: i32, %arg1: i32) -> (i32, i32) {
    %c0_i32 = arith.constant 0 : i32
    %c0_i32_0 = arith.constant 0 : i32
    return %arg0, %c0_i32 : i32, i32
  }
  func.func @transform_1(%arg0: i32, %arg1: i32) -> (i32, i32) {
    %c0_i32 = arith.constant 0 : i32
    %c0_i32_0 = arith.constant 0 : i32
    return %c0_i32, %arg1 : i32, i32
  }
  func.func @transform_2(%arg0: i32, %arg1: i32) -> (i32, i32) {
    %c0_i32 = arith.constant 0 : i32
    %c0_i32_0 = arith.constant 0 : i32
    return %c0_i32, %arg1 : i32, i32
  }
  func.func @transform_3(%arg0: i32, %arg1: i32) -> (i32, i32) {
    %c0_i32 = arith.constant 0 : i32
    %c0_i32_0 = arith.constant 0 : i32
    return %arg0, %c0_i32 : i32, i32
  }
  func.func @transform_4(%arg0: i32, %arg1: i32) -> (i32, i32) {
    %c0_i32 = arith.constant 0 : i32
    %c0_i32_0 = arith.constant 0 : i32
    return %c0_i32, %arg1 : i32, i32
  }
  func.func @transform_5(%arg0: i32, %arg1: i32) -> (i32, i32) {
    %c0_i32 = arith.constant 0 : i32
    return %arg0, %arg1 : i32, i32
  }
}

</mosaic_0001>

<llo_original>
// kernel: tpu_custom_call.1
$region0: #{tpu_custom_call.1}
  #allocation0 [shape = 'u32[]', space=smem, size = 0x4, offset = 0x4, fixed_abs, tag = 'smem constant byte address 0x4 - core index']
  #allocation1 [shape = 'u32[144,128]{1,0:T(1,128)}', space=vmem, size = 0x12000, scoped, tag = 'internal scratch']
  %s0 = inlined_call_operand.hbm [shape: bf16[128,128], index: 0, kind: input, shape index: {}]
  %s1 = inlined_call_operand.hbm [shape: bf16[128,128], index: 1, kind: input, shape index: {}]
  %s2 = inlined_call_operand.vmem [shape: f32[1,128], index: 2, kind: input, shape index: {}]
  %s3 = inlined_call_operand.hbm [shape: bf16[128,128], index: 3, kind: input, shape index: {}]
  %s4 = inlined_call_operand.hbm [shape: bf16[128,128], index: 4, kind: input, shape index: {}]
  %s5 = inlined_call_operand.hbm [shape: bf16[128,128], index: 5, kind: output, shape index: {}]
  %s6 = sld [smem:[#allocation0]]
  $region46: #{tpu_custom_call.1} parent=0
    _
  %s8 = ssub.s32 1, %s6
  %s9 = scalar_select 0, %s8, %s6
  $region1: #{tpu_custom_call.1} parent=0
    #allocation2 [shape = 'u8[32768]{0}', space=vmem, size = 0x8000, scoped, tag = 'input window, operand 0, single buffered']
    #allocation3 [shape = 's32[1]{0}', space=sflag, size = 0x4, scoped, tag = 'scoped memory for tpu_custom_call.1']
    #allocation4 [shape = 's32[1]{0}', space=sflag, size = 0x4, scoped, tag = 'scoped memory for tpu_custom_call.1']
    #allocation5 [shape = 'u8[32768]{0}', space=vmem, size = 0x8000, scoped, tag = 'input window, operand 1, single buffered']
    #allocation6 [shape = 's32[1]{0}', space=sflag, size = 0x4, scoped, tag = 'scoped memory for tpu_custom_call.1']
    #allocation7 [shape = 'u8[32768]{0}', space=vmem, size = 0x8000, scoped, tag = 'input window, operand 3, single buffered']
    #allocation8 [shape = 'u8[32768]{0}', space=vmem, size = 0x8000, scoped, tag = 'input window, operand 4, single buffered']
    #allocation9 [shape = 's32[1]{0}', space=sflag, size = 0x4, scoped, tag = 'scoped memory for tpu_custom_call.1']
    #allocation10 [shape = 'u8[32768]{0}', space=vmem, size = 0x8000, scoped, tag = 'output window, operand 0, single buffered']
    %10 = vsyncpa [#allocation3], 0
    %11 = vsyncpa [#allocation6], 0
    %12 = vsyncpa [#allocation9], 0
    %13 = vsyncpa [#allocation4], 0
    // Predicated region
    $region2: #{tpu_custom_call.1} parent=1 // pred_check
      _
    $region3: #{tpu_custom_call.1} parent=1 // pred_check_branch
      %15 = sbr.rel (0) target = $region5
    $region4: #{tpu_custom_call.1} parent=1 // pred_region
      %s17 = ssub.s32 1024, 1024
      %18 = vsyncadd [#allocation3], %s17
      %s19 = sshll.u32 [#allocation2], 4
      %s20 = int_to_ptr.vmem [resolvable:$true] %s19
      %25 = dma.hbm_to_vmem [thread:$0]  %s0, 1024, %s20, [#allocation3], 64, 64, 4
    $region5: #{tpu_custom_call.1} parent=1 // pred_fallthru
      _
    // Predicated region
    $region6: #{tpu_custom_call.1} parent=1 // pred_check
      _
    $region7: #{tpu_custom_call.1} parent=1 // pred_check_branch
      %27 = sbr.rel (0) target = $region9
    $region8: #{tpu_custom_call.1} parent=1 // pred_region
      %s29 = ssub.s32 1024, 1024
      %30 = vsyncadd [#allocation6], %s29
      %s31 = sshll.u32 [#allocation5], 4
      %s32 = int_to_ptr.vmem [resolvable:$true] %s31
      %37 = dma.hbm_to_vmem [thread:$0]  %s1, 1024, %s32, [#allocation6], 64, 64, 4
    $region9: #{tpu_custom_call.1} parent=1 // pred_fallthru
      _
    // Predicated region
    $region10: #{tpu_custom_call.1} parent=1 // pred_check
      _
    $region11: #{tpu_custom_call.1} parent=1 // pred_check_branch
      %39 = sbr.rel (0) target = $region13
    $region12: #{tpu_custom_call.1} parent=1 // pred_region
      _
    $region13: #{tpu_custom_call.1} parent=1 // pred_fallthru
      _
    // Predicated region
    $region14: #{tpu_custom_call.1} parent=1 // pred_check
      _
    $region15: #{tpu_custom_call.1} parent=1 // pred_check_branch
      %41 = sbr.rel (0) target = $region17
    $region16: #{tpu_custom_call.1} parent=1 // pred_region
      %s43 = ssub.s32 1024, 1024
      %44 = vsyncadd [#allocation6], %s43
      %s45 = sshll.u32 [#allocation7], 4
      %s46 = int_to_ptr.vmem [resolvable:$true] %s45
      %51 = dma.hbm_to_vmem [thread:$0]  %s3, 1024, %s46, [#allocation6], 64, 64, 4
    $region17: #{tpu_custom_call.1} parent=1 // pred_fallthru
      _
    // Predicated region
    $region18: #{tpu_custom_call.1} parent=1 // pred_check
      _
    $region19: #{tpu_custom_call.1} parent=1 // pred_check_branch
      %53 = sbr.rel (0) target = $region21
    $region20: #{tpu_custom_call.1} parent=1 // pred_region
      %s55 = ssub.s32 1024, 1024
      %56 = vsyncadd [#allocation9], %s55
      %s57 = sshll.u32 [#allocation8], 4
      %s58 = int_to_ptr.vmem [resolvable:$true] %s57
      %63 = dma.hbm_to_vmem [thread:$0]  %s4, 1024, %s58, [#allocation9], 64, 64, 4
    $region21: #{tpu_custom_call.1} parent=1 // pred_fallthru
      _
    // Predicated region
    $region22: #{tpu_custom_call.1} parent=1 // pred_check
      _
    $region23: #{tpu_custom_call.1} parent=1 // pred_check_branch
      %65 = sbr.rel (0) target = $region25
    $region24: #{tpu_custom_call.1} parent=1 // pred_region
      %66 = dma.done [#allocation3], 1024
    $region25: #{tpu_custom_call.1} parent=1 // pred_fallthru
      _
    // Predicated region
    $region26: #{tpu_custom_call.1} parent=1 // pred_check
      _
    $region27: #{tpu_custom_call.1} parent=1 // pred_check_branch
      %68 = sbr.rel (0) target = $region29
    $region28: #{tpu_custom_call.1} parent=1 // pred_region
      %69 = dma.done [#allocation6], 1024
    $region29: #{tpu_custom_call.1} parent=1 // pred_fallthru
      _
    // Predicated region
    $region30: #{tpu_custom_call.1} parent=1 // pred_check
      _
    $region31: #{tpu_custom_call.1} parent=1 // pred_check_branch
      %71 = sbr.rel (0) target = $region33
    $region32: #{tpu_custom_call.1} parent=1 // pred_region
      %72 = dma.done [#allocation6], 1024
    $region33: #{tpu_custom_call.1} parent=1 // pred_fallthru
      _
    // Predicated region
    $region34: #{tpu_custom_call.1} parent=1 // pred_check
      _
    $region35: #{tpu_custom_call.1} parent=1 // pred_check_branch
      %74 = sbr.rel (0) target = $region37
    $region36: #{tpu_custom_call.1} parent=1 // pred_region
      %75 = dma.done [#allocation9], 1024
    $region37: #{tpu_custom_call.1} parent=1 // pred_fallthru
      _
    %v77 = vld [vmem:[#allocation2] sm:$0xf]
    %v78 = vld [vmem:[#allocation2 + $0x4] sm:$0xf]
    %v79 = vld [vmem:[#allocation2 + $0x8] sm:$0xf]
    %v80 = vld [vmem:[#allocation2 + $0xc] sm:$0xf]
    %v81 = vld [vmem:[#allocation2 + $0x10] sm:$0xf]
    %v82 = vld [vmem:[#allocation2 + $0x14] sm:$0xf]
    %v83 = vld [vmem:[#allocation2 + $0x18] sm:$0xf]
    %v84 = vld [vmem:[#allocation2 + $0x1c] sm:$0xf]
    %v85 = vld [vmem:[#allocation2 + $0x20] sm:$0xf]
    %v86 = vld [vmem:[#allocation2 + $0x24] sm:$0xf]
    %v87 = vld [vmem:[#allocation2 + $0x28] sm:$0xf]
    %v88 = vld [vmem:[#allocation2 + $0x2c] sm:$0xf]
    %v89 = vld [vmem:[#allocation2 + $0x30] sm:$0xf]
    %v90 = vld [vmem:[#allocation2 + $0x34] sm:$0xf]
    %v91 = vld [vmem:[#allocation2 + $0x38] sm:$0xf]
    %v92 = vld [vmem:[#allocation2 + $0x3c] sm:$0xf]
    %v93 = vld [vmem:[#allocation5] sm:$0xf]
    %v94 = vld [vmem:[#allocation5 + $0x4] sm:$0xf]
    %v95 = vld [vmem:[#allocation5 + $0x8] sm:$0xf]
    %v96 = vld [vmem:[#allocation5 + $0xc] sm:$0xf]
    %v97 = vld [vmem:[#allocation5 + $0x10] sm:$0xf]
    %v98 = vld [vmem:[#allocation5 + $0x14] sm:$0xf]
    %v99 = vld [vmem:[#allocation5 + $0x18] sm:$0xf]
    %v100 = vld [vmem:[#allocation5 + $0x1c] sm:$0xf]
    %v101 = vld [vmem:[#allocation5 + $0x20] sm:$0xf]
    %v102 = vld [vmem:[#allocation5 + $0x24] sm:$0xf]
    %v103 = vld [vmem:[#allocation5 + $0x28] sm:$0xf]
    %v104 = vld [vmem:[#allocation5 + $0x2c] sm:$0xf]
    %v105 = vld [vmem:[#allocation5 + $0x30] sm:$0xf]
    %v106 = vld [vmem:[#allocation5 + $0x34] sm:$0xf]
    %v107 = vld [vmem:[#allocation5 + $0x38] sm:$0xf]
    %v108 = vld [vmem:[#allocation5 + $0x3c] sm:$0xf]
    %v109 = vld [vmem:[#allocation7] sm:$0xf]
    %v110 = vld [vmem:[#allocation7 + $0x4] sm:$0xf]
    %v111 = vld [vmem:[#allocation7 + $0x8] sm:$0xf]
    %v112 = vld [vmem:[#allocation7 + $0xc] sm:$0xf]
    %v113 = vld [vmem:[#allocation7 + $0x10] sm:$0xf]
    %v114 = vld [vmem:[#allocation7 + $0x14] sm:$0xf]
    %v115 = vld [vmem:[#allocation7 + $0x18] sm:$0xf]
    %v116 = vld [vmem:[#allocation7 + $0x1c] sm:$0xf]
    %v117 = vld [vmem:[#allocation7 + $0x20] sm:$0xf]
    %v118 = vld [vmem:[#allocation7 + $0x24] sm:$0xf]
    %v119 = vld [vmem:[#allocation7 + $0x28] sm:$0xf]
    %v120 = vld [vmem:[#allocation7 + $0x2c] sm:$0xf]
    %v121 = vld [vmem:[#allocation7 + $0x30] sm:$0xf]
    %v122 = vld [vmem:[#allocation7 + $0x34] sm:$0xf]
    %v123 = vld [vmem:[#allocation7 + $0x38] sm:$0xf]
    %v124 = vld [vmem:[#allocation7 + $0x3c] sm:$0xf]
    %v125 = vld [vmem:[#allocation8] sm:$0xf]
    %v126 = vld [vmem:[#allocation8 + $0x4] sm:$0xf]
    %v127 = vld [vmem:[#allocation8 + $0x8] sm:$0xf]
    %v128 = vld [vmem:[#allocation8 + $0xc] sm:$0xf]
    %v129 = vld [vmem:[#allocation8 + $0x10] sm:$0xf]
    %v130 = vld [vmem:[#allocation8 + $0x14] sm:$0xf]
    %v131 = vld [vmem:[#allocation8 + $0x18] sm:$0xf]
    %v132 = vld [vmem:[#allocation8 + $0x1c] sm:$0xf]
    %v133 = vld [vmem:[#allocation8 + $0x20] sm:$0xf]
    %v134 = vld [vmem:[#allocation8 + $0x24] sm:$0xf]
    %v135 = vld [vmem:[#allocation8 + $0x28] sm:$0xf]
    %v136 = vld [vmem:[#allocation8 + $0x2c] sm:$0xf]
    %v137 = vld [vmem:[#allocation8 + $0x30] sm:$0xf]
    %v138 = vld [vmem:[#allocation8 + $0x34] sm:$0xf]
    %v139 = vld [vmem:[#allocation8 + $0x38] sm:$0xf]
    %v140 = vld [vmem:[#allocation8 + $0x3c] sm:$0xf]
    %v157 = vunpack.c.l.b16 %v109
    %v158 = vunpack.c.l.b16 %v110
    %v159 = vunpack.c.l.b16 %v111
    %v160 = vunpack.c.l.b16 %v112
    %v161 = vunpack.c.l.b16 %v113
    %v162 = vunpack.c.l.b16 %v114
    %v163 = vunpack.c.l.b16 %v115
    %v164 = vunpack.c.l.b16 %v116
    %v165 = vunpack.c.l.b16 %v117
    %v166 = vunpack.c.l.b16 %v118
    %v167 = vunpack.c.l.b16 %v119
    %v168 = vunpack.c.l.b16 %v120
    %v169 = vunpack.c.l.b16 %v121
    %v170 = vunpack.c.l.b16 %v122
    %v171 = vunpack.c.l.b16 %v123
    %v172 = vunpack.c.l.b16 %v124
    %v173 = vpack.c.b16 %v158, %v157
    %v174 = vpack.c.b16 %v160, %v159
    %v175 = vpack.c.b16 %v162, %v161
    %v176 = vpack.c.b16 %v164, %v163
    %v177 = vpack.c.b16 %v166, %v165
    %v178 = vpack.c.b16 %v168, %v167
    %v179 = vpack.c.b16 %v170, %v169
    %v180 = vpack.c.b16 %v172, %v171
    %v205 = vunpack.c.l.b16 %v125
    %v206 = vunpack.c.l.b16 %v126
    %v207 = vunpack.c.l.b16 %v127
    %v208 = vunpack.c.l.b16 %v128
    %v209 = vunpack.c.l.b16 %v129
    %v210 = vunpack.c.l.b16 %v130
    %v211 = vunpack.c.l.b16 %v131
    %v212 = vunpack.c.l.b16 %v132
    %v213 = vunpack.c.l.b16 %v133
    %v214 = vunpack.c.l.b16 %v134
    %v215 = vunpack.c.l.b16 %v135
    %v216 = vunpack.c.l.b16 %v136
    %v217 = vunpack.c.l.b16 %v137
    %v218 = vunpack.c.l.b16 %v138
    %v219 = vunpack.c.l.b16 %v139
    %v220 = vunpack.c.l.b16 %v140
    %v221 = vpack.c.b16 %v206, %v205
    %v222 = vpack.c.b16 %v208, %v207
    %v223 = vpack.c.b16 %v210, %v209
    %v224 = vpack.c.b16 %v212, %v211
    %v225 = vpack.c.b16 %v214, %v213
    %v226 = vpack.c.b16 %v216, %v215
    %v227 = vpack.c.b16 %v218, %v217
    %v228 = vpack.c.b16 %v220, %v219
    %237 = vmatprep.subr.bf16.mxu0 0
    %238 = vmatpush1.bf16.msra.mxu0 %v221
    %239 = vmatprep.subr.bf16.mxu0 0
    %240 = vmatpush1.bf16.msra.mxu0 %v222
    %241 = vmatprep.subr.bf16.mxu0 0
    %242 = vmatpush1.bf16.msra.mxu0 %v223
    %243 = vmatprep.subr.bf16.mxu0 0
    %244 = vmatpush1.bf16.msra.mxu0 %v224
    %245 = vmatprep.subr.bf16.mxu0 0
    %246 = vmatpush1.bf16.msra.mxu0 %v225
    %247 = vmatprep.subr.bf16.mxu0 0
    %248 = vmatpush1.bf16.msra.mxu0 %v226
    %249 = vmatprep.subr.bf16.mxu0 0
    %250 = vmatpush1.bf16.msra.mxu0 %v227
    %251 = vmatprep.subr.bf16.mxu0 0
    %252 = vmatpush1.bf16.msra.mxu0 %v228
    %253 = vmatprep.subr.bf16.mxu0 0
    %254 = vmatpush1.bf16.msra.mxu0 0
    %255 = vmatprep.subr.bf16.mxu0 0
    %256 = vmatpush1.bf16.msra.mxu0 0
    %257 = vmatprep.subr.bf16.mxu0 0
    %258 = vmatpush1.bf16.msra.mxu0 0
    %259 = vmatprep.subr.bf16.mxu0 0
    %260 = vmatpush1.bf16.msra.mxu0 0
    %261 = vmatprep.subr.bf16.mxu0 0
    %262 = vmatpush1.bf16.msra.mxu0 0
    %263 = vmatprep.subr.bf16.mxu0 0
    %264 = vmatpush1.bf16.msra.mxu0 0
    %265 = vmatprep.subr.bf16.mxu0 0
    %266 = vmatpush1.bf16.msra.mxu0 0
    %267 = vmatprep.subr.bf16.mxu0 0
    %268 = vmatpush1.bf16.msra.mxu0 0
    %269 = vmatprep.mubr.bf16.mxu0 0
    %270 = vmatmul.mubr.bf16.gmra.mrb[0].mxu0 %v173
    %v271 = vpop.f32.mrb[0].mxu0
    %v272 = vadd.f32 0.0, %v271
    %v273 = vpop.f32.mrb[0].mxu0
    %v274 = vpop.f32.mrb[0].mxu0
    %v275 = vadd.f32 0.0, %v274
    %v276 = vpop.f32.mrb[0].mxu0
    %277 = vmatprep.mubr.bf16.mxu0 0
    %278 = vmatmul.mubr.bf16.gmra.mrb[0].mxu0 %v174
    %v279 = vpop.f32.mrb[0].mxu0
    %v280 = vadd.f32 0.0, %v279
    %v281 = vpop.f32.mrb[0].mxu0
    %v282 = vpop.f32.mrb[0].mxu0
    %v283 = vadd.f32 0.0, %v282
    %v284 = vpop.f32.mrb[0].mxu0
    %285 = vmatprep.mubr.bf16.mxu0 0
    %286 = vmatmul.mubr.bf16.gmra.mrb[0].mxu0 %v175
    %v287 = vpop.f32.mrb[0].mxu0
    %v288 = vadd.f32 0.0, %v287
    %v289 = vpop.f32.mrb[0].mxu0
    %v290 = vpop.f32.mrb[0].mxu0
    %v291 = vadd.f32 0.0, %v290
    %v292 = vpop.f32.mrb[0].mxu0
    %293 = vmatprep.mubr.bf16.mxu0 0
    %294 = vmatmul.mubr.bf16.gmra.mrb[0].mxu0 %v176
    %v295 = vpop.f32.mrb[0].mxu0
    %v296 = vadd.f32 0.0, %v295
    %v297 = vpop.f32.mrb[0].mxu0
    %v298 = vpop.f32.mrb[0].mxu0
    %v299 = vadd.f32 0.0, %v298
    %v300 = vpop.f32.mrb[0].mxu0
    %301 = vmatprep.mubr.bf16.mxu0 0
    %302 = vmatmul.mubr.bf16.gmra.mrb[0].mxu0 %v177
    %v303 = vpop.f32.mrb[0].mxu0
    %v304 = vadd.f32 0.0, %v303
    %v305 = vpop.f32.mrb[0].mxu0
    %v306 = vpop.f32.mrb[0].mxu0
    %v307 = vadd.f32 0.0, %v306
    %v308 = vpop.f32.mrb[0].mxu0
    %309 = vmatprep.mubr.bf16.mxu0 0
    %310 = vmatmul.mubr.bf16.gmra.mrb[0].mxu0 %v178
    %v311 = vpop.f32.mrb[0].mxu0
    %v312 = vadd.f32 0.0, %v311
    %v313 = vpop.f32.mrb[0].mxu0
    %v314 = vpop.f32.mrb[0].mxu0
    %v315 = vadd.f32 0.0, %v314
    %v316 = vpop.f32.mrb[0].mxu0
    %317 = vmatprep.mubr.bf16.mxu0 0
    %318 = vmatmul.mubr.bf16.gmra.mrb[0].mxu0 %v179
    %v319 = vpop.f32.mrb[0].mxu0
    %v320 = vadd.f32 0.0, %v319
    %v321 = vpop.f32.mrb[0].mxu0
    %v322 = vpop.f32.mrb[0].mxu0
    %v323 = vadd.f32 0.0, %v322
    %v324 = vpop.f32.mrb[0].mxu0
    %325 = vmatprep.mubr.bf16.mxu0 0
    %326 = vmatmul.mubr.bf16.gmra.mrb[0].mxu0 %v180
    %v327 = vpop.f32.mrb[0].mxu0
    %v328 = vadd.f32 0.0, %v327
    %v329 = vpop.f32.mrb[0].mxu0
    %v330 = vpop.f32.mrb[0].mxu0
    %v331 = vadd.f32 0.0, %v330
    %v332 = vpop.f32.mrb[0].mxu0
    %333 = vdwg.mxu0
    %v350 = vunpack.c.l.b16 %v77
    %v351 = vunpack.c.l.b16 %v78
    %v352 = vunpack.c.l.b16 %v79
    %v353 = vunpack.c.l.b16 %v80
    %v354 = vunpack.c.l.b16 %v81
    %v355 = vunpack.c.l.b16 %v82
    %v356 = vunpack.c.l.b16 %v83
    %v357 = vunpack.c.l.b16 %v84
    %v358 = vunpack.c.l.b16 %v85
    %v359 = vunpack.c.l.b16 %v86
    %v360 = vunpack.c.l.b16 %v87
    %v361 = vunpack.c.l.b16 %v88
    %v362 = vunpack.c.l.b16 %v89
    %v363 = vunpack.c.l.b16 %v90
    %v364 = vunpack.c.l.b16 %v91
    %v365 = vunpack.c.l.b16 %v92
    %v366 = vpack.c.b16 %v351, %v350
    %v367 = vpack.c.b16 %v353, %v352
    %v368 = vpack.c.b16 %v355, %v354
    %v369 = vpack.c.b16 %v357, %v356
    %v370 = vpack.c.b16 %v359, %v358
    %v371 = vpack.c.b16 %v361, %v360
    %v372 = vpack.c.b16 %v363, %v362
    %v373 = vpack.c.b16 %v365, %v364
    %v398 = vunpack.c.l.b16 %v93
    %v399 = vunpack.c.l.b16 %v94
    %v400 = vunpack.c.l.b16 %v95
    %v401 = vunpack.c.l.b16 %v96
    %v402 = vunpack.c.l.b16 %v97
    %v403 = vunpack.c.l.b16 %v98
    %v404 = vunpack.c.l.b16 %v99
    %v405 = vunpack.c.l.b16 %v100
    %v406 = vunpack.c.l.b16 %v101
    %v407 = vunpack.c.l.b16 %v102
    %v408 = vunpack.c.l.b16 %v103
    %v409 = vunpack.c.l.b16 %v104
    %v410 = vunpack.c.l.b16 %v105
    %v411 = vunpack.c.l.b16 %v106
    %v412 = vunpack.c.l.b16 %v107
    %v413 = vunpack.c.l.b16 %v108
    %v414 = vpack.c.b16 %v399, %v398
    %v415 = vpack.c.b16 %v401, %v400
    %v416 = vpack.c.b16 %v403, %v402
    %v417 = vpack.c.b16 %v405, %v404
    %v418 = vpack.c.b16 %v407, %v406
    %v419 = vpack.c.b16 %v409, %v408
    %v420 = vpack.c.b16 %v411, %v410
    %v421 = vpack.c.b16 %v413, %v412
    %430 = vmatprep.subr.bf16.mxu0 0
    %431 = vmatpush1.bf16.msra.mxu0 %v414
    %432 = vmatprep.subr.bf16.mxu0 0
    %433 = vmatpush1.bf16.msra.mxu0 %v415
    %434 = vmatprep.subr.bf16.mxu0 0
    %435 = vmatpush1.bf16.msra.mxu0 %v416
    %436 = vmatprep.subr.bf16.mxu0 0
    %437 = vmatpush1.bf16.msra.mxu0 %v417
    %438 = vmatprep.subr.bf16.mxu0 0
    %439 = vmatpush1.bf16.msra.mxu0 %v418
    %440 = vmatprep.subr.bf16.mxu0 0
    %441 = vmatpush1.bf16.msra.mxu0 %v419
    %442 = vmatprep.subr.bf16.mxu0 0
    %443 = vmatpush1.bf16.msra.mxu0 %v420
    %444 = vmatprep.subr.bf16.mxu0 0
    %445 = vmatpush1.bf16.msra.mxu0 %v421
    %446 = vmatprep.subr.bf16.mxu0 0
    %447 = vmatpush1.bf16.msra.mxu0 0
    %448 = vmatprep.subr.bf16.mxu0 0
    %449 = vmatpush1.bf16.msra.mxu0 0
    %450 = vmatprep.subr.bf16.mxu0 0
    %451 = vmatpush1.bf16.msra.mxu0 0
    %452 = vmatprep.subr.bf16.mxu0 0
    %453 = vmatpush1.bf16.msra.mxu0 0
    %454 = vmatprep.subr.bf16.mxu0 0
    %455 = vmatpush1.bf16.msra.mxu0 0
    %456 = vmatprep.subr.bf16.mxu0 0
    %457 = vmatpush1.bf16.msra.mxu0 0
    %458 = vmatprep.subr.bf16.mxu0 0
    %459 = vmatpush1.bf16.msra.mxu0 0
    %460 = vmatprep.subr.bf16.mxu0 0
    %461 = vmatpush1.bf16.msra.mxu0 0
    %462 = vmatprep.mubr.bf16.mxu0 0
    %463 = vmatmul.mubr.bf16.gmra.mrb[0].mxu0 %v366
    %v464 = vpop.f32.mrb[0].mxu0
    %v465 = vadd.f32 %v272, %v464
    %v466 = vpop.f32.mrb[0].mxu0
    %v467 = vpop.f32.mrb[0].mxu0
    %v468 = vadd.f32 %v275, %v467
    %v469 = vpop.f32.mrb[0].mxu0
    %470 = vmatprep.mubr.bf16.mxu0 0
    %471 = vmatmul.mubr.bf16.gmra.mrb[0].mxu0 %v367
    %v472 = vpop.f32.mrb[0].mxu0
    %v473 = vadd.f32 %v280, %v472
    %v474 = vpop.f32.mrb[0].mxu0
    %v475 = vpop.f32.mrb[0].mxu0
    %v476 = vadd.f32 %v283, %v475
    %v477 = vpop.f32.mrb[0].mxu0
    %478 = vmatprep.mubr.bf16.mxu0 0
    %479 = vmatmul.mubr.bf16.gmra.mrb[0].mxu0 %v368
    %v480 = vpop.f32.mrb[0].mxu0
    %v481 = vadd.f32 %v288, %v480
    %v482 = vpop.f32.mrb[0].mxu0
    %v483 = vpop.f32.mrb[0].mxu0
    %v484 = vadd.f32 %v291, %v483
    %v485 = vpop.f32.mrb[0].mxu0
    %486 = vmatprep.mubr.bf16.mxu0 0
    %487 = vmatmul.mubr.bf16.gmra.mrb[0].mxu0 %v369
    %v488 = vpop.f32.mrb[0].mxu0
    %v489 = vadd.f32 %v296, %v488
    %v490 = vpop.f32.mrb[0].mxu0
    %v491 = vpop.f32.mrb[0].mxu0
    %v492 = vadd.f32 %v299, %v491
    %v493 = vpop.f32.mrb[0].mxu0
    %494 = vmatprep.mubr.bf16.mxu0 0
    %495 = vmatmul.mubr.bf16.gmra.mrb[0].mxu0 %v370
    %v496 = vpop.f32.mrb[0].mxu0
    %v497 = vadd.f32 %v304, %v496
    %v498 = vpop.f32.mrb[0].mxu0
    %v499 = vpop.f32.mrb[0].mxu0
    %v500 = vadd.f32 %v307, %v499
    %v501 = vpop.f32.mrb[0].mxu0
    %502 = vmatprep.mubr.bf16.mxu0 0
    %503 = vmatmul.mubr.bf16.gmra.mrb[0].mxu0 %v371
    %v504 = vpop.f32.mrb[0].mxu0
    %v505 = vadd.f32 %v312, %v504
    %v506 = vpop.f32.mrb[0].mxu0
    %v507 = vpop.f32.mrb[0].mxu0
    %v508 = vadd.f32 %v315, %v507
    %v509 = vpop.f32.mrb[0].mxu0
    %510 = vmatprep.mubr.bf16.mxu0 0
    %511 = vmatmul.mubr.bf16.gmra.mrb[0].mxu0 %v372
    %v512 = vpop.f32.mrb[0].mxu0
    %v513 = vadd.f32 %v320, %v512
    %v514 = vpop.f32.mrb[0].mxu0
    %v515 = vpop.f32.mrb[0].mxu0
    %v516 = vadd.f32 %v323, %v515
    %v517 = vpop.f32.mrb[0].mxu0
    %518 = vmatprep.mubr.bf16.mxu0 0
    %519 = vmatmul.mubr.bf16.gmra.mrb[0].mxu0 %v373
    %v520 = vpop.f32.mrb[0].mxu0
    %v521 = vadd.f32 %v328, %v520
    %v522 = vpop.f32.mrb[0].mxu0
    %v523 = vpop.f32.mrb[0].mxu0
    %v524 = vadd.f32 %v331, %v523
    %v525 = vpop.f32.mrb[0].mxu0
    %526 = vdwg.mxu0
    %v527 = vld [vmem:[%s2] sm:$0x1]
    %v529 = vlaneseq
    %v530 = vshrl.u32 %v529, 7
    %v531 = vsub.s32 0, %v530
    %v532 = vrot.slane %v527, %v531
    %v534 = vadd.f32 %v465, %v532
    %v535 = vadd.f32 %v468, %v532
    %v536 = vadd.f32 %v473, %v532
    %v537 = vadd.f32 %v476, %v532
    %v538 = vadd.f32 %v481, %v532
    %v539 = vadd.f32 %v484, %v532
    %v540 = vadd.f32 %v489, %v532
    %v541 = vadd.f32 %v492, %v532
    %v542 = vadd.f32 %v497, %v532
    %v543 = vadd.f32 %v500, %v532
    %v544 = vadd.f32 %v505, %v532
    %v545 = vadd.f32 %v508, %v532
    %v546 = vadd.f32 %v513, %v532
    %v547 = vadd.f32 %v516, %v532
    %v548 = vadd.f32 %v521, %v532
    %v549 = vadd.f32 %v524, %v532
    %v550 = vpack.c.bf16 %v535, %v534
    %v551 = vpack.c.bf16 %v537, %v536
    %v552 = vpack.c.bf16 %v539, %v538
    %v553 = vpack.c.bf16 %v541, %v540
    %v554 = vpack.c.bf16 %v543, %v542
    %v555 = vpack.c.bf16 %v545, %v544
    %v556 = vpack.c.bf16 %v547, %v546
    %v557 = vpack.c.bf16 %v549, %v548
    %v566 = vunpack.c.l.b16 %v550
    %v567 = vunpack.c.h.b16 %v550
    %v568 = vunpack.c.l.b16 %v551
    %v569 = vunpack.c.h.b16 %v551
    %v570 = vunpack.c.l.b16 %v552
    %v571 = vunpack.c.h.b16 %v552
    %v572 = vunpack.c.l.b16 %v553
    %v573 = vunpack.c.h.b16 %v553
    %v574 = vunpack.c.l.b16 %v554
    %v575 = vunpack.c.h.b16 %v554
    %v576 = vunpack.c.l.b16 %v555
    %v577 = vunpack.c.h.b16 %v555
    %v578 = vunpack.c.l.b16 %v556
    %v579 = vunpack.c.h.b16 %v556
    %v580 = vunpack.c.l.b16 %v557
    %v581 = vunpack.c.h.b16 %v557
    %v582 = vpack.c.b16 %v566, %v566
    %v583 = vpack.c.b16 %v567, %v567
    %v584 = vpack.c.b16 %v568, %v568
    %v585 = vpack.c.b16 %v569, %v569
    %v586 = vpack.c.b16 %v570, %v570
    %v587 = vpack.c.b16 %v571, %v571
    %v588 = vpack.c.b16 %v572, %v572
    %v589 = vpack.c.b16 %v573, %v573
    %v590 = vpack.c.b16 %v574, %v574
    %v591 = vpack.c.b16 %v575, %v575
    %v592 = vpack.c.b16 %v576, %v576
    %v593 = vpack.c.b16 %v577, %v577
    %v594 = vpack.c.b16 %v578, %v578
    %v595 = vpack.c.b16 %v579, %v579
    %v596 = vpack.c.b16 %v580, %v580
    %v597 = vpack.c.b16 %v581, %v581
    %614 = vst [vmem:[#allocation10] sm:$0xf] %v582
    %615 = vst [vmem:[#allocation10 + $0x4] sm:$0xf] %v583
    %616 = vst [vmem:[#allocation10 + $0x8] sm:$0xf] %v584
    %617 = vst [vmem:[#allocation10 + $0xc] sm:$0xf] %v585
    %618 = vst [vmem:[#allocation10 + $0x10] sm:$0xf] %v586
    %619 = vst [vmem:[#allocation10 + $0x14] sm:$0xf] %v587
    %620 = vst [vmem:[#allocation10 + $0x18] sm:$0xf] %v588
    %621 = vst [vmem:[#allocation10 + $0x1c] sm:$0xf] %v589
    %622 = vst [vmem:[#allocation10 + $0x20] sm:$0xf] %v590
    %623 = vst [vmem:[#allocation10 + $0x24] sm:$0xf] %v591
    %624 = vst [vmem:[#allocation10 + $0x28] sm:$0xf] %v592
    %625 = vst [vmem:[#allocation10 + $0x2c] sm:$0xf] %v593
    %626 = vst [vmem:[#allocation10 + $0x30] sm:$0xf] %v594
    %627 = vst [vmem:[#allocation10 + $0x34] sm:$0xf] %v595
    %628 = vst [vmem:[#allocation10 + $0x38] sm:$0xf] %v596
    %629 = vst [vmem:[#allocation10 + $0x3c] sm:$0xf] %v597
    // Predicated region
    $region38: #{tpu_custom_call.1} parent=1 // pred_check
      _
    $region39: #{tpu_custom_call.1} parent=1 // pred_check_branch
      %631 = sbr.rel (0) target = $region41
    $region40: #{tpu_custom_call.1} parent=1 // pred_region
      %s633 = ssub.s32 1024, 1024
      %634 = vsyncadd [#allocation4], %s633
      %s635 = sshll.u32 [#allocation10], 4
      %s636 = int_to_ptr.vmem [resolvable:$true] %s635
      %641 = dma.vmem_to_hbm [thread:$0]  %s636, 1024, %s5, [#allocation4], 64, 64, 4
    $region41: #{tpu_custom_call.1} parent=1 // pred_fallthru
      _
    // Predicated region
    $region42: #{tpu_custom_call.1} parent=1 // pred_check
      _
    $region43: #{tpu_custom_call.1} parent=1 // pred_check_branch
      %643 = sbr.rel (0) target = $region45
    $region44: #{tpu_custom_call.1} parent=1 // pred_region
      %644 = dma.done [#allocation4], 1024
    $region45: #{tpu_custom_call.1} parent=1 // pred_fallthru
      _
    %645 = vsyncpa [#allocation3], 1
    %646 = vsyncpa [#allocation6], 1
    %647 = vsyncpa [#allocation9], 1
    %648 = vsyncpa [#allocation4], 1

</llo_original>
